<compile_context>
chip_gen: v7x
topology: tpu7x:2x2x1
jax: 0.10.0
libtpu: 0.0.40
codegen_flags: <defaults>
</compile_context>

<pallas_src>
import functools

import jax
import jax.numpy as jnp
from jax.experimental import pallas as pl
from jax.experimental.pallas import tpu as pltpu


def _ce_label_smooth_kernel(logits_ref, tgt_ref, out_ref, *, epsilon, num_classes):
    # logits_ref: (TM, C) in VMEM, tgt_ref: (TM, 1) int32 in VMEM, out_ref: (TM, 1) f32.
    tm, c = logits_ref.shape
    x = logits_ref[...].astype(jnp.float32)                      # fused upcast, (TM, C)
    tgt = tgt_ref[...]                                           # (TM, 1) int32

    # --- stable log-softmax: logp = (x - m) - log(sum(exp(x - m))) ---
    m = jnp.max(x, axis=1, keepdims=True)                        # (TM, 1)
    shifted = x - m                                              # (TM, C)
    log_z = jnp.log(jnp.sum(jnp.exp(shifted), axis=1, keepdims=True))  # (TM, 1)

    # sum_c logp[n, c]  =  sum_c shifted[n, c] - C * log_z[n]
    sum_logp = jnp.sum(shifted, axis=1, keepdims=True) - float(c) * log_z

    # logp[n, t_n]: one-hot gather via broadcasted iota compare (no transposes).
    col_ids = jax.lax.broadcasted_iota(jnp.int32, (tm, c), 1)    # (TM, C)
    tgt_logp = (
        jnp.sum(jnp.where(col_ids == tgt, shifted, 0.0), axis=1, keepdims=True)
        - log_z
    )

    # per-row label-smoothed CE (mean over batch is done in the wrapper).
    out_ref[...] = (
        -(1.0 - epsilon) * tgt_logp - (epsilon / num_classes) * sum_logp
    )


def cross_entropy_label_smooth(inputs, targets, *, num_classes=None, epsilon=0.1,
                               label_smooth=True, block_rows=256):
    """JAX/Pallas equivalent of CrossEntropyLoss_LabelSmooth(...).forward(inputs, targets)."""
    n, c = inputs.shape
    if num_classes is None:
        num_classes = c
    eps = float(epsilon) if label_smooth else 0.0
    tgt2d = targets.astype(jnp.int32).reshape(n, 1)

    # Row tiling: single block for small batches, `block_rows`-row tiles otherwise
    # (multiple of 8 sublanes; a 256 x C f32 tile fits scoped VMEM on v5e/v6e/v7x).
    if n <= 2 * block_rows:
        tm, n_pad = n, n
    else:
        tm = block_rows
        n_pad = pl.cdiv(n, tm) * tm

    x = inputs
    if n_pad != n:
        x = jnp.pad(x, ((0, n_pad - n), (0, 0)))
        tgt2d = jnp.pad(tgt2d, ((0, n_pad - n), (0, 0)))

    kernel = functools.partial(
        _ce_label_smooth_kernel, epsilon=eps, num_classes=float(num_classes))

    per_row = pl.pallas_call(
        kernel,
        out_shape=jax.ShapeDtypeStruct((n_pad, 1), jnp.float32),
        grid=(n_pad // tm,),
        in_specs=[
            pl.BlockSpec((tm, c), lambda i: (i, 0)),   # logits row-block, full class dim
            pl.BlockSpec((tm, 1), lambda i: (i, 0)),   # target indices row-block
        ],
        out_specs=pl.BlockSpec((tm, 1), lambda i: (i, 0)),
        compiler_params=pltpu.CompilerParams(
            dimension_semantics=("parallel",)),        # independent row blocks
    )(x, tgt2d)

    # mean over the real batch rows (drops padded rows), then the class-sum is
    # already folded into per_row.
    return jnp.sum(per_row[:n, 0]) / jnp.float32(n)


def _reference_loss(inputs, targets, num_classes, epsilon=0.1, label_smooth=True):
    """Pure-JAX reference mirroring the PyTorch module, for validation."""
    eps = epsilon if label_smooth else 0.0
    logp = jax.nn.log_softmax(inputs.astype(jnp.float32), axis=1)
    onehot = jax.nn.one_hot(targets, logp.shape[1], dtype=jnp.float32)
    t = (1.0 - eps) * onehot + eps / num_classes
    return jnp.sum(jnp.mean(-t * logp, axis=0))


if __name__ == "__main__":
    key = jax.random.PRNGKey(0)
    k1, k2, k3, k4 = jax.random.split(key, 4)

    # Small shapes consistent with the module: batch=8 logits over 32 classes.
    N, C = 8, 32
    logits = jax.random.normal(k1, (N, C), dtype=jnp.float32)
    targets = jax.random.randint(k2, (N,), 0, C, dtype=jnp.int32)

    loss_smooth = cross_entropy_label_smooth(logits, targets, num_classes=C, epsilon=0.1)
    loss_plain = cross_entropy_label_smooth(logits, targets, num_classes=C,
                                            epsilon=0.1, label_smooth=False)

    # Also exercise the tiled (multi-block + row-padding) path.
    N2, C2 = 200, 48
    logits2 = jax.random.normal(k3, (N2, C2), dtype=jnp.float32)
    targets2 = jax.random.randint(k4, (N2,), 0, C2, dtype=jnp.int32)
    loss_tiled = cross_entropy_label_smooth(logits2, targets2, num_classes=C2,
                                            epsilon=0.1, block_rows=64)

    jax.block_until_ready((loss_smooth, loss_plain, loss_tiled))

    ref_smooth = _reference_loss(logits, targets, C, 0.1, True)
    ref_plain = _reference_loss(logits, targets, C, 0.1, False)
    ref_tiled = _reference_loss(logits2, targets2, C2, 0.1, True)
    assert jnp.allclose(loss_smooth, ref_smooth, atol=1e-5, rtol=1e-5)
    assert jnp.allclose(loss_plain, ref_plain, atol=1e-5, rtol=1e-5)
    assert jnp.allclose(loss_tiled, ref_tiled, atol=1e-5, rtol=1e-5)

    print("KERNEL_OK")
</pallas_src>

<mosaic_0001>
module attributes {stable_mosaic.version = 11 : i64} {
  func.func @_ce_label_smooth_kernel(%arg0: i32, %arg1: memref<8x32xf32, #tpu.memory_space<vmem>>, %arg2: memref<8x1xi32, #tpu.memory_space<vmem>>, %arg3: memref<8x1xf32, #tpu.memory_space<vmem>>) attributes {dimension_semantics = [#tpu.dimension_semantics<parallel>], iteration_bounds = array<i64: 1>, scalar_prefetch = 0 : i64, scratch_operands = 0 : i64, tpu.core_type = #tpu.core_type<tc>, window_params = [{transform_indices = @transform_0, window_bounds = array<i64: 8, 32>}, {transform_indices = @transform_1, window_bounds = array<i64: 8, 1>}, {transform_indices = @transform_2, window_bounds = array<i64: 8, 1>}]} {
    %c0 = arith.constant 0 : index
    %c0_0 = arith.constant 0 : index
    %0 = vector.load %arg1[%c0, %c0_0] : memref<8x32xf32, #tpu.memory_space<vmem>>, vector<8x32xf32>
    %c0_1 = arith.constant 0 : index
    %c0_2 = arith.constant 0 : index
    %1 = vector.load %arg2[%c0_1, %c0_2] : memref<8x1xi32, #tpu.memory_space<vmem>>, vector<8x1xi32>
    %cst = arith.constant dense<0xFF800000> : vector<8xf32>
    %2 = vector.multi_reduction <maximumf>, %0, %cst [1] : vector<8x32xf32> to vector<8xf32>
    %3 = vector.shape_cast %2 : vector<8xf32> to vector<8x1xf32>
    %4 = vector.broadcast %3 : vector<8x1xf32> to vector<8x32xf32>
    %5 = arith.subf %0, %4 : vector<8x32xf32>
    %6 = math.exp %5 : vector<8x32xf32>
    %cst_3 = arith.constant dense<0.000000e+00> : vector<8xf32>
    %7 = vector.multi_reduction <add>, %6, %cst_3 [1] : vector<8x32xf32> to vector<8xf32>
    %8 = vector.shape_cast %7 : vector<8xf32> to vector<8x1xf32>
    %9 = math.log %8 : vector<8x1xf32>
    %cst_4 = arith.constant dense<0.000000e+00> : vector<8xf32>
    %10 = vector.multi_reduction <add>, %5, %cst_4 [1] : vector<8x32xf32> to vector<8xf32>
    %11 = vector.shape_cast %10 : vector<8xf32> to vector<8x1xf32>
    %cst_5 = arith.constant 3.200000e+01 : f32
    %12 = vector.broadcast %cst_5 : f32 to vector<8x1xf32>
    %13 = arith.mulf %12, %9 : vector<8x1xf32>
    %14 = arith.subf %11, %13 : vector<8x1xf32>
    %15 = tpu.iota {dimensions = array<i32: 1>} : vector<8x32xi32>
    %16 = vector.broadcast %1 : vector<8x1xi32> to vector<8x32xi32>
    %17 = arith.cmpi eq, %15, %16 : vector<8x32xi32>
    %cst_6 = arith.constant 0.000000e+00 : f32
    %18 = vector.broadcast %cst_6 : f32 to vector<8x32xf32>
    %19 = arith.select %17, %5, %18 : vector<8x32xi1>, vector<8x32xf32>
    %cst_7 = arith.constant dense<0.000000e+00> : vector<8xf32>
    %20 = vector.multi_reduction <add>, %19, %cst_7 [1] : vector<8x32xf32> to vector<8xf32>
    %21 = vector.shape_cast %20 : vector<8xf32> to vector<8x1xf32>
    %22 = arith.subf %21, %9 : vector<8x1xf32>
    %cst_8 = arith.constant -0.899999976 : f32
    %23 = vector.broadcast %cst_8 : f32 to vector<8x1xf32>
    %24 = arith.mulf %23, %22 : vector<8x1xf32>
    %cst_9 = arith.constant 3.125000e-03 : f32
    %25 = vector.broadcast %cst_9 : f32 to vector<8x1xf32>
    %26 = arith.mulf %25, %14 : vector<8x1xf32>
    %27 = arith.subf %24, %26 : vector<8x1xf32>
    %c0_10 = arith.constant 0 : index
    %c0_11 = arith.constant 0 : index
    %28 = vector.load %arg3[%c0_10, %c0_11] : memref<8x1xf32, #tpu.memory_space<vmem>>, vector<8x1xf32>
    tpu.vector_store %arg3[%c0_10, %c0_11], %27 {strides = array<i32>} : memref<8x1xf32, #tpu.memory_space<vmem>>, vector<8x1xf32>,
    return
  }
  func.func @transform_0(%arg0: i32) -> (i32, i32) {
    %c0_i32 = arith.constant 0 : i32
    %c0_i32_0 = arith.constant 0 : i32
    return %arg0, %c0_i32 : i32, i32
  }
  func.func @transform_1(%arg0: i32) -> (i32, i32) {
    %c0_i32 = arith.constant 0 : i32
    %c0_i32_0 = arith.constant 0 : i32
    return %arg0, %c0_i32 : i32, i32
  }
  func.func @transform_2(%arg0: i32) -> (i32, i32) {
    %c0_i32 = arith.constant 0 : i32
    %c0_i32_0 = arith.constant 0 : i32
    return %arg0, %c0_i32 : i32, i32
  }
}

</mosaic_0001>

<llo_original>
// kernel: tpu_custom_call.1
$region0: #{tpu_custom_call.1}
  #allocation0 [shape = 'u32[]', space=smem, size = 0x4, offset = 0x4, fixed_abs, tag = 'smem constant byte address 0x4 - core index']
  #allocation1 [shape = 'u32[144,128]{1,0:T(1,128)}', space=vmem, size = 0x12000, scoped, tag = 'internal scratch']
  %s0 = inlined_call_operand.vmem [shape: f32[8,32], index: 0, kind: input, shape index: {}]
  %s1 = inlined_call_operand.vmem [shape: s32[8,1], index: 1, kind: input, shape index: {}]
  %s2 = inlined_call_operand.vmem [shape: f32[8,1], index: 2, kind: output, shape index: {}]
  %s3 = sld [smem:[#allocation0]]
  $region18: #{tpu_custom_call.1} parent=0
    _
  %s5 = ssub.s32 1, %s3
  %s6 = scalar_select 0, %s5, %s3
  // Predicated region
  $region2: #{tpu_custom_call.1} parent=0 // pred_check
    _
  $region3: #{tpu_custom_call.1} parent=0 // pred_check_branch
    %8 = sbr.rel (0) target = $region5
  $region4: #{tpu_custom_call.1} parent=0 // pred_region
    _
  $region5: #{tpu_custom_call.1} parent=0 // pred_fallthru
    _
  // Predicated region
  $region6: #{tpu_custom_call.1} parent=0 // pred_check
    _
  $region7: #{tpu_custom_call.1} parent=0 // pred_check_branch
    %10 = sbr.rel (0) target = $region9
  $region8: #{tpu_custom_call.1} parent=0 // pred_region
    _
  $region9: #{tpu_custom_call.1} parent=0 // pred_fallthru
    _
  %v11 = vld [vmem:[%s0] sm:$0xff]
  %v12 = vld [vmem:[%s1] sm:$0xff]
  %vm13 = vcmask 261120
  %v14 = vsel %vm13, %v11, -inf
  %15 = vmax.xlane.f32.xlu0 %v14
  %v16 = vpop.xlane.xlu0 %15
  %v17 = vsub.f32 %v11, %v16
  %v18 = vmul.f32 %v17, 1.442695
  %v19 = vpow.pop %v18
  %v20 = vsel %vm13, %v19, 0.0
  %21 = vadd.xlane.f32.xlu0 %v20
  %v22 = vpop.xlane.xlu0 %21
  %v23 = vlog2.pop %v22
  %v24 = vmul.f32 %v23, 0.6931472
  %v25 = vsel %vm13, %v17, 0.0
  %26 = vadd.xlane.f32.xlu0 %v25
  %v27 = vpop.xlane.xlu0 %26
  %v28 = vmul.f32 %v24, 32.0
  %v29 = vsub.f32 %v27, %v28
  %v30 = vlaneseq
  %v31 = vand.u32 %v30, 127
  %32 = vset.pattern.permute.xlu0 0
  %33 = vperm.xlu0 %32, %v12
  %v34 = vpop.permute.xlu0 %33
  %vm35 = vcmp.eq.s32.totalorder %v31, %v34
  %v36 = vsel %vm35, %v17, 0.0
  %v37 = vsel %vm13, %v36, 0.0
  %38 = vadd.xlane.f32.xlu0 %v37
  %v39 = vpop.xlane.xlu0 %38
  %v40 = vsub.f32 %v39, %v24
  %v41 = vmul.f32 %v40, -0.9
  %v42 = vmul.f32 %v29, 0.003125
  %v43 = vsub.f32 %v41, %v42
  %vm44 = vcmask 7168
  %45 = vst.msk [vmem:[%s2] sm:$0xff] %vm44, %v43
  // Predicated region
  $region10: #{tpu_custom_call.1} parent=0 // pred_check
    _
  $region11: #{tpu_custom_call.1} parent=0 // pred_check_branch
    %47 = sbr.rel (0) target = $region13
  $region12: #{tpu_custom_call.1} parent=0 // pred_region
    _
  $region13: #{tpu_custom_call.1} parent=0 // pred_fallthru
    _
  // Predicated region
  $region14: #{tpu_custom_call.1} parent=0 // pred_check
    _
  $region15: #{tpu_custom_call.1} parent=0 // pred_check_branch
    %49 = sbr.rel (0) target = $region17
  $region16: #{tpu_custom_call.1} parent=0 // pred_region
    _
  $region17: #{tpu_custom_call.1} parent=0 // pred_fallthru
    _

</llo_original>
